<compile_context>
chip_gen: v7x
topology: tpu7x:2x2x1
jax: 0.10.0
libtpu: 0.0.40
codegen_flags: <defaults>
</compile_context>

<pallas_src>
import functools
import math

import jax
import jax.numpy as jnp
from jax import lax
from jax.experimental import pallas as pl
from jax.experimental.pallas import tpu as pltpu

# ---- Module parameters (from BMAELoss.__init__ defaults) --------------------
WEIGHTS = [1.0, 2.0, 5.0, 10.0, 15.0, 20.0, 25.0, 30.0]
RAW_THRESHOLDS = [1.0, 5.0, 10.0, 20.0, 30.0, 40.0, 50.0, 90.0]
MAX_VALUE = 90.0
IF_LOG = True

if IF_LOG:
    _LOG_MAX = math.log(1.0 + MAX_VALUE)
    THRESHOLDS = [math.log(1.0 + t) / _LOG_MAX for t in RAW_THRESHOLDS]
else:
    THRESHOLDS = [t / MAX_VALUE for t in RAW_THRESHOLDS]

LANES = 128
ROWS_PER_TILE = 6144                   # 3 MiB f32 input tile per operand
VMEM_LIMIT_BYTES = 48 * 1024 * 1024    # fits v5e/v6e (128 MiB) and v7x (64 MiB)


def _num_tensorcores():
    """2 on v7x (two TensorCores per device); 1 on v5e/v6e and as safe default."""
    try:
        kind = jax.devices()[0].device_kind.lower()
    except Exception:
        return 1
    return 2 if ("v7" in kind or "7x" in kind) else 1


def _weight(y):
    """Per-pixel weight. Equal to the torch in-place chain
         w = y.clone(); for i: w[w < thresholds[i]] = weights[i]
    Every assigned weight is >= 1.0 and the compare is a strict '<' with
    max(thresholds) == 1.0, so earlier assignments never re-trigger: the chain
    is a pure bucketization of the ORIGINAL y (weights[i] for the first i with
    y < thresholds[i]; keep y when no threshold triggers, i.e. y == 1.0).
    Written as a nested select on y: all 8 compares are independent of the
    select chain (same VALU op count as the serial form, half the depth)."""
    w = y
    for wi, ti in zip(reversed(WEIGHTS), reversed(THRESHOLDS)):
        w = jnp.where(y < jnp.float32(ti), jnp.float32(wi), w)
    return w


def _contrib(yp_f32, yt_f32):
    return _weight(yt_f32) * jnp.abs(yp_f32 - yt_f32)


# ---- Kernel A: single block (rows < ROWS_PER_TILE) ---------------------------
def _bmae_small_kernel(yp_ref, yt_ref, out_ref):
    yt = yt_ref[...].astype(jnp.float32)
    yp = yp_ref[...].astype(jnp.float32)
    out_ref[...] = jnp.sum(_contrib(yp, yt)).reshape(1, 1)


# ---- Kernel B: streaming reduction over (ROWS_PER_TILE, 128) tiles -----------
def _bmae_stream_kernel(tile_rows, tiles_per_core, rows_valid, need_mask,
                        yp_ref, yt_ref, out_ref, acc_ref):
    c = pl.program_id(0)          # TensorCore shard ("parallel")
    i = pl.program_id(1)          # streaming / reduction axis ("arbitrary")

    @pl.when(i == 0)
    def _():
        acc_ref[...] = jnp.zeros_like(acc_ref)

    yt = yt_ref[...].astype(jnp.float32)
    yp = yp_ref[...].astype(jnp.float32)
    contrib = _contrib(yp, yt)

    def fold(x):
        # (tile_rows, 128) -> (8, 128): groups whole (8,128) vregs; pure VALU adds.
        return x.reshape(tile_rows // 8, 8, LANES).sum(axis=0)

    if not need_mask:
        # Fully aligned specialization: no mask, no branch, no index math.
        acc_ref[...] = acc_ref[...] + fold(contrib)
    else:
        row0 = (c * tiles_per_core + i) * tile_rows
        is_full = row0 + tile_rows <= rows_valid

        @pl.when(is_full)
        def _():
            acc_ref[...] = acc_ref[...] + fold(contrib)

        @pl.when(jnp.logical_not(is_full))
        def _():
            # Select-based masking: OOB rows of a partial edge block (or of a
            # clamped duplicate block on the second core) may hold DMA garbage
            # or NaNs and must be dropped via select, never via a multiply.
            ridx = lax.broadcasted_iota(jnp.int32, (tile_rows, LANES), 0) + row0
            masked = jnp.where(ridx < rows_valid, contrib, jnp.float32(0.0))
            acc_ref[...] = acc_ref[...] + fold(masked)

    @pl.when(i == tiles_per_core - 1)
    def _():
        out_ref[...] = jnp.sum(acc_ref[...]).reshape(1, 1, 1)


def _sum_main(yp2d, yt2d, rows):
    """Sum of weighted |err| over a lane-aligned (rows, 128) slab."""
    if rows < ROWS_PER_TILE:
        out = pl.pallas_call(
            _bmae_small_kernel,
            out_shape=jax.ShapeDtypeStruct((1, 1), jnp.float32),
            compiler_params=pltpu.CompilerParams(vmem_limit_bytes=VMEM_LIMIT_BYTES),
        )(yp2d, yt2d)
        return out[0, 0]

    tile_rows = ROWS_PER_TILE
    n_blocks = (rows + tile_rows - 1) // tile_rows
    n_cores = min(_num_tensorcores(), n_blocks)
    tiles_per_core = (n_blocks + n_cores - 1) // n_cores
    clamp = n_cores * tiles_per_core > n_blocks       # second core has extra tiles
    need_mask = clamp or (rows % tile_rows != 0)      # partial edge block exists

    if clamp:
        def in_map(c, i):
            # Extra tiles of the last core map onto a real block; their
            # contribution is fully masked to zero inside the kernel.
            return (jnp.minimum(c * tiles_per_core + i, n_blocks - 1), 0)
    else:
        def in_map(c, i):
            return (c * tiles_per_core + i, 0)

    kernel = functools.partial(_bmae_stream_kernel, tile_rows, tiles_per_core,
                               rows, need_mask)
    parts = pl.pallas_call(
        kernel,
        out_shape=jax.ShapeDtypeStruct((n_cores, 1, 1), jnp.float32),
        grid_spec=pltpu.PrefetchScalarGridSpec(
            num_scalar_prefetch=0,
            grid=(n_cores, tiles_per_core),
            in_specs=[
                pl.BlockSpec((tile_rows, LANES), in_map),
                pl.BlockSpec((tile_rows, LANES), in_map),
            ],
            out_specs=pl.BlockSpec((1, 1, 1), lambda c, i: (c, 0, 0)),
            scratch_shapes=[pltpu.VMEM((8, LANES), jnp.float32)],
        ),
        compiler_params=pltpu.CompilerParams(
            dimension_semantics=("parallel", "arbitrary"),
            vmem_limit_bytes=VMEM_LIMIT_BYTES,
        ),
    )(yp2d, yt2d)
    return jnp.sum(parts)


def bmae_loss(y_pre, y_true):
    """Weighted MAE == torch BMAELoss().forward(y_pre, y_true). Returns a scalar."""
    assert y_pre.shape == y_true.shape
    n_valid = math.prod([int(d) for d in y_pre.shape])
    assert n_valid > 0

    # Keep native dtype (kernel casts per tile); flatten row-major (free reshape).
    yp = jnp.ravel(y_pre)
    yt = jnp.ravel(y_true)

    rows = n_valid // LANES
    n_main = rows * LANES
    total = jnp.float32(0.0)

    # Ragged tail (< 128 elements): fold in with plain jnp instead of jnp.pad-ing
    # a second full HBM copy of both inputs.
    if n_main < n_valid:
        tp = yp[n_main:].astype(jnp.float32)
        tt = yt[n_main:].astype(jnp.float32)
        total = total + jnp.sum(_contrib(tp, tt))

    if rows > 0:
        if n_main < n_valid:
            ypm, ytm = yp[:n_main], yt[:n_main]
        else:
            ypm, ytm = yp, yt
        total = total + _sum_main(ypm.reshape(rows, LANES),
                                  ytm.reshape(rows, LANES), rows)

    return total / jnp.float32(n_valid)


def _bmae_loss_ref(y_pre, y_true):
    """Pure-JAX reference mirroring the torch loop (serial in-place form)."""
    w = y_true.astype(jnp.float32)
    for wi, ti in zip(WEIGHTS, THRESHOLDS):
        w = jnp.where(w < jnp.float32(ti), jnp.float32(wi), w)
    return jnp.mean(w * jnp.abs(y_pre.astype(jnp.float32) - y_true.astype(jnp.float32)))


def _check(shape, key):
    k1, k2 = jax.random.split(key)
    y_true = jax.random.uniform(k1, shape, dtype=jnp.float32)   # in [0, 1)
    y_pre = jax.random.uniform(k2, shape, dtype=jnp.float32)
    loss = jax.block_until_ready(bmae_loss(y_pre, y_true))
    ref = jax.block_until_ready(_bmae_loss_ref(y_pre, y_true))
    assert jnp.isfinite(loss), (shape, loss)
    err = abs(float(loss) - float(ref))
    assert err <= 1e-5 + 5e-4 * abs(float(ref)), (shape, float(loss), float(ref))


if __name__ == "__main__":
    key = jax.random.PRNGKey(0)
    keys = jax.random.split(key, 4)

    # Primary small case consistent with the module: N=2, C=4, H=W=16.
    _check((2, 4, 16, 16), keys[0])
    # Ragged numel (tail folded in with plain jnp; no padded copy).
    _check((2, 3, 100, 47), keys[1])
    # Multi-tile stream with a partial boundary tile (mask / clamp path).
    _check((2, 2, 512, 512), keys[2])
    # Multi-tile stream that is exactly tile- and core-aligned (maskless path).
    _check((3, 4, 512, 256), keys[3])

    print("KERNEL_OK")
</pallas_src>

<mosaic_0001>
module attributes {stable_mosaic.version = 11 : i64} {
  func.func @_bmae_small_kernel(%arg0: memref<16x128xf32, #tpu.memory_space<vmem>>, %arg1: memref<16x128xf32, #tpu.memory_space<vmem>>, %arg2: memref<1x1xf32, #tpu.memory_space<vmem>>) attributes {dimension_semantics = [], scalar_prefetch = 0 : i64, scratch_operands = 0 : i64, tpu.core_type = #tpu.core_type<tc>} {
    %c0 = arith.constant 0 : index
    %c0_0 = arith.constant 0 : index
    %0 = vector.load %arg1[%c0, %c0_0] : memref<16x128xf32, #tpu.memory_space<vmem>>, vector<16x128xf32>
    %c0_1 = arith.constant 0 : index
    %c0_2 = arith.constant 0 : index
    %1 = vector.load %arg0[%c0_1, %c0_2] : memref<16x128xf32, #tpu.memory_space<vmem>>, vector<16x128xf32>
    %cst = arith.constant 1.000000e+00 : f32
    %2 = vector.broadcast %cst : f32 to vector<16x128xf32>
    %3 = arith.cmpf olt, %0, %2 : vector<16x128xf32>
    %cst_3 = arith.constant 3.000000e+01 : f32
    %4 = vector.broadcast %cst_3 : f32 to vector<16x128xf32>
    %5 = arith.select %3, %4, %0 : vector<16x128xi1>, vector<16x128xf32>
    %cst_4 = arith.constant 0.871635556 : f32
    %6 = vector.broadcast %cst_4 : f32 to vector<16x128xf32>
    %7 = arith.cmpf olt, %0, %6 : vector<16x128xf32>
    %cst_5 = arith.constant 2.500000e+01 : f32
    %8 = vector.broadcast %cst_5 : f32 to vector<16x128xf32>
    %9 = arith.select %7, %8, %5 : vector<16x128xi1>, vector<16x128xf32>
    %cst_6 = arith.constant 0.823251545 : f32
    %10 = vector.broadcast %cst_6 : f32 to vector<16x128xf32>
    %11 = arith.cmpf olt, %0, %10 : vector<16x128xf32>
    %cst_7 = arith.constant 2.000000e+01 : f32
    %12 = vector.broadcast %cst_7 : f32 to vector<16x128xf32>
    %13 = arith.select %11, %12, %9 : vector<16x128xi1>, vector<16x128xf32>
    %cst_8 = arith.constant 0.761271178 : f32
    %14 = vector.broadcast %cst_8 : f32 to vector<16x128xf32>
    %15 = arith.cmpf olt, %0, %14 : vector<16x128xf32>
    %cst_9 = arith.constant 1.500000e+01 : f32
    %16 = vector.broadcast %cst_9 : f32 to vector<16x128xf32>
    %17 = arith.select %15, %16, %13 : vector<16x128xi1>, vector<16x128xf32>
    %cst_10 = arith.constant 0.674931765 : f32
    %18 = vector.broadcast %cst_10 : f32 to vector<16x128xf32>
    %19 = arith.cmpf olt, %0, %18 : vector<16x128xf32>
    %cst_11 = arith.constant 1.000000e+01 : f32
    %20 = vector.broadcast %cst_11 : f32 to vector<16x128xf32>
    %21 = arith.select %19, %20, %17 : vector<16x128xi1>, vector<16x128xf32>
    %cst_12 = arith.constant 0.531582773 : f32
    %22 = vector.broadcast %cst_12 : f32 to vector<16x128xf32>
    %23 = arith.cmpf olt, %0, %22 : vector<16x128xf32>
    %cst_13 = arith.constant 5.000000e+00 : f32
    %24 = vector.broadcast %cst_13 : f32 to vector<16x128xf32>
    %25 = arith.select %23, %24, %21 : vector<16x128xi1>, vector<16x128xf32>
    %cst_14 = arith.constant 0.397210211 : f32
    %26 = vector.broadcast %cst_14 : f32 to vector<16x128xf32>
    %27 = arith.cmpf olt, %0, %26 : vector<16x128xf32>
    %cst_15 = arith.constant 2.000000e+00 : f32
    %28 = vector.broadcast %cst_15 : f32 to vector<16x128xf32>
    %29 = arith.select %27, %28, %25 : vector<16x128xi1>, vector<16x128xf32>
    %cst_16 = arith.constant 0.153661892 : f32
    %30 = vector.broadcast %cst_16 : f32 to vector<16x128xf32>
    %31 = arith.cmpf olt, %0, %30 : vector<16x128xf32>
    %cst_17 = arith.constant 1.000000e+00 : f32
    %32 = vector.broadcast %cst_17 : f32 to vector<16x128xf32>
    %33 = arith.select %31, %32, %29 : vector<16x128xi1>, vector<16x128xf32>
    %34 = arith.subf %1, %0 : vector<16x128xf32>
    %35 = math.absf %34 : vector<16x128xf32>
    %36 = arith.mulf %33, %35 : vector<16x128xf32>
    %37 = vector.shape_cast %36 : vector<16x128xf32> to vector<1x16x128xf32>
    %cst_18 = arith.constant dense<0.000000e+00> : vector<1xf32>
    %38 = vector.multi_reduction <add>, %37, %cst_18 [1, 2] : vector<1x16x128xf32> to vector<1xf32>
    %39 = vector.shape_cast %38 : vector<1xf32> to vector<1x1x1xf32>
    %40 = vector.extract %39[0, 0, 0] : f32 from vector<1x1x1xf32>
    %41 = vector.broadcast %40 : f32 to vector<1x1xf32>
    %c0_19 = arith.constant 0 : index
    %c0_20 = arith.constant 0 : index
    %42 = vector.load %arg2[%c0_19, %c0_20] : memref<1x1xf32, #tpu.memory_space<vmem>>, vector<1x1xf32>
    tpu.vector_store %arg2[%c0_19, %c0_20], %41 {strides = array<i32>} : memref<1x1xf32, #tpu.memory_space<vmem>>, vector<1x1xf32>,
    return
  }
}

</mosaic_0001>

<llo_original>
// kernel: tpu_custom_call.1
$region0: #{tpu_custom_call.1}
  #allocation0 [shape = 'u32[]', space=smem, size = 0x4, offset = 0x4, fixed_abs, tag = 'smem constant byte address 0x4 - core index']
  #allocation1 [shape = 'u32[144,128]{1,0:T(1,128)}', space=vmem, size = 0x12000, scoped, tag = 'internal scratch']
  %s0 = inlined_call_operand.hbm [shape: f32[16,128], index: 0, kind: input, shape index: {}]
  %s1 = inlined_call_operand.hbm [shape: f32[16,128], index: 1, kind: input, shape index: {}]
  %s2 = inlined_call_operand.hbm [shape: f32[1,1], index: 2, kind: output, shape index: {}]
  %s3 = sld [smem:[#allocation0]]
  $region26: #{tpu_custom_call.1} parent=0
    _
  %s5 = ssub.s32 1, %s3
  %s6 = scalar_select 0, %s5, %s3
  $region1: #{tpu_custom_call.1} parent=0
    #allocation2 [shape = 'u8[8192]{0}', space=vmem, size = 0x2000, scoped, tag = 'input window, operand 0, single buffered']
    #allocation3 [shape = 's32[1]{0}', space=sflag, size = 0x4, scoped, tag = 'scoped memory for tpu_custom_call.1']
    #allocation4 [shape = 's32[1]{0}', space=sflag, size = 0x4, scoped, tag = 'scoped memory for tpu_custom_call.1']
    #allocation5 [shape = 'u8[8192]{0}', space=vmem, size = 0x2000, scoped, tag = 'input window, operand 1, single buffered']
    #allocation6 [shape = 's32[1]{0}', space=sflag, size = 0x4, scoped, tag = 'scoped memory for tpu_custom_call.1']
    #allocation7 [shape = 'u8[512]{0}', space=vmem, size = 0x400, scoped, tag = 'output window, operand 0, single buffered']
    %7 = vsyncpa [#allocation3], 0
    %8 = vsyncpa [#allocation6], 0
    %9 = vsyncpa [#allocation4], 0
    // Predicated region
    $region2: #{tpu_custom_call.1} parent=1 // pred_check
      _
    $region3: #{tpu_custom_call.1} parent=1 // pred_check_branch
      %11 = sbr.rel (0) target = $region5
    $region4: #{tpu_custom_call.1} parent=1 // pred_region
      %s13 = ssub.s32 256, 256
      %14 = vsyncadd [#allocation3], %s13
      %s15 = sshll.u32 [#allocation2], 4
      %s16 = int_to_ptr.vmem [resolvable:$true] %s15
      %21 = dma.hbm_to_vmem [thread:$0]  %s0, 256, %s16, [#allocation3], 128, 128, 8
    $region5: #{tpu_custom_call.1} parent=1 // pred_fallthru
      _
    // Predicated region
    $region6: #{tpu_custom_call.1} parent=1 // pred_check
      _
    $region7: #{tpu_custom_call.1} parent=1 // pred_check_branch
      %23 = sbr.rel (0) target = $region9
    $region8: #{tpu_custom_call.1} parent=1 // pred_region
      %s25 = ssub.s32 256, 256
      %26 = vsyncadd [#allocation6], %s25
      %s27 = sshll.u32 [#allocation5], 4
      %s28 = int_to_ptr.vmem [resolvable:$true] %s27
      %33 = dma.hbm_to_vmem [thread:$0]  %s1, 256, %s28, [#allocation6], 128, 128, 8
    $region9: #{tpu_custom_call.1} parent=1 // pred_fallthru
      _
    // Predicated region
    $region10: #{tpu_custom_call.1} parent=1 // pred_check
      _
    $region11: #{tpu_custom_call.1} parent=1 // pred_check_branch
      %35 = sbr.rel (0) target = $region13
    $region12: #{tpu_custom_call.1} parent=1 // pred_region
      %36 = dma.done [#allocation3], 256
    $region13: #{tpu_custom_call.1} parent=1 // pred_fallthru
      _
    // Predicated region
    $region14: #{tpu_custom_call.1} parent=1 // pred_check
      _
    $region15: #{tpu_custom_call.1} parent=1 // pred_check_branch
      %38 = sbr.rel (0) target = $region17
    $region16: #{tpu_custom_call.1} parent=1 // pred_region
      %39 = dma.done [#allocation6], 256
    $region17: #{tpu_custom_call.1} parent=1 // pred_fallthru
      _
    %v40 = vld [vmem:[#allocation5] sm:$0xff]
    %v41 = vld [vmem:[#allocation5 + $0x8] sm:$0xff]
    %v42 = vld [vmem:[#allocation2] sm:$0xff]
    %v43 = vld [vmem:[#allocation2 + $0x8] sm:$0xff]
    %vm44 = vcmp.lt.f32.partialorder %v40, 1.0
    %vm45 = vcmp.lt.f32.partialorder %v41, 1.0
    %v46 = vsel %vm44, 30.0, %v40
    %v47 = vsel %vm45, 30.0, %v41
    %vm48 = vcmp.lt.f32.partialorder %v40, 0.87163556
    %vm49 = vcmp.lt.f32.partialorder %v41, 0.87163556
    %v50 = vsel %vm48, 25.0, %v46
    %v51 = vsel %vm49, 25.0, %v47
    %vm52 = vcmp.lt.f32.partialorder %v40, 0.82325155
    %vm53 = vcmp.lt.f32.partialorder %v41, 0.82325155
    %v54 = vsel %vm52, 20.0, %v50
    %v55 = vsel %vm53, 20.0, %v51
    %vm56 = vcmp.lt.f32.partialorder %v40, 0.7612712
    %vm57 = vcmp.lt.f32.partialorder %v41, 0.7612712
    %v58 = vsel %vm56, 15.0, %v54
    %v59 = vsel %vm57, 15.0, %v55
    %vm60 = vcmp.lt.f32.partialorder %v40, 0.67493176
    %vm61 = vcmp.lt.f32.partialorder %v41, 0.67493176
    %v62 = vsel %vm60, 10.0, %v58
    %v63 = vsel %vm61, 10.0, %v59
    %vm64 = vcmp.lt.f32.partialorder %v40, 0.5315828
    %vm65 = vcmp.lt.f32.partialorder %v41, 0.5315828
    %v66 = vsel %vm64, 5.0, %v62
    %v67 = vsel %vm65, 5.0, %v63
    %vm68 = vcmp.lt.f32.partialorder %v40, 0.3972102
    %vm69 = vcmp.lt.f32.partialorder %v41, 0.3972102
    %v70 = vsel %vm68, 2.0, %v66
    %v71 = vsel %vm69, 2.0, %v67
    %vm72 = vcmp.lt.f32.partialorder %v40, 0.15366189
    %vm73 = vcmp.lt.f32.partialorder %v41, 0.15366189
    %v74 = vsel %vm72, 1.0, %v70
    %v75 = vsel %vm73, 1.0, %v71
    %v76 = vsub.f32 %v42, %v40
    %v77 = vsub.f32 %v43, %v41
    %v78 = vand.u32 2147483647, %v76
    %v79 = vand.u32 2147483647, %v77
    %v80 = vmul.f32 %v74, %v78
    %v81 = vmul.f32 %v75, %v79
    %v82 = vadd.f32 %v80, %v81
    %83 = vadd.xlane.f32.xlu0 %v82
    %v84 = vpop.xlane.xlu0 %83
    %v85 = vrot.slane %v84, 4
    %v86 = vadd.f32 %v84, %v85
    %v87 = vrot.slane %v86, 2
    %v88 = vadd.f32 %v86, %v87
    %v89 = vrot.slane %v88, 1
    %v90 = vadd.f32 %v88, %v89
    %s91 = vtos %v90
    %v92 = vstv %s91
    %vm93 = vcmask 0
    %94 = vst.msk [vmem:[#allocation7] sm:$0x1] %vm93, %v92
    // Predicated region
    $region18: #{tpu_custom_call.1} parent=1 // pred_check
      _
    $region19: #{tpu_custom_call.1} parent=1 // pred_check_branch
      %96 = sbr.rel (0) target = $region21
    $region20: #{tpu_custom_call.1} parent=1 // pred_region
      %s98 = ssub.s32 16, 16
      %99 = vsyncadd [#allocation4], %s98
      %s101 = sshll.u32 [#allocation7], 4
      %s102 = int_to_ptr.vmem [resolvable:$true] %s101
      %104 = dma.vmem_to_hbm [thread:$0]  %s102, 16, %s2, [#allocation4]
    $region21: #{tpu_custom_call.1} parent=1 // pred_fallthru
      _
    // Predicated region
    $region22: #{tpu_custom_call.1} parent=1 // pred_check
      _
    $region23: #{tpu_custom_call.1} parent=1 // pred_check_branch
      %106 = sbr.rel (0) target = $region25
    $region24: #{tpu_custom_call.1} parent=1 // pred_region
      %107 = dma.done [#allocation4], 16
    $region25: #{tpu_custom_call.1} parent=1 // pred_fallthru
      _
    %108 = vsyncpa [#allocation3], 1
    %109 = vsyncpa [#allocation6], 1
    %110 = vsyncpa [#allocation4], 1

</llo_original>
